<compile_context>
chip_gen: v5e
topology: v5e:2x2
jax: 0.10.0
libtpu: 0.0.40
codegen_flags: <defaults>
</compile_context>

<pallas_src>
import functools

import jax
import jax.numpy as jnp
from jax.experimental import pallas as pl
from jax.experimental.pallas import tpu as pltpu


def actor_kernel(xt_ref, w1_ref, b1_ref, w2_ref, b2_ref, w3_ref, b3_ref, o_ref,
                 *, max_action):
    """Feature-major layout: activations [features, batch_tile],
    weights [out, in] (PyTorch layout), biases [out, 1]."""
    cdt = w1_ref.dtype  # matmul compute dtype (bf16 by default; f32 also supported)

    # Layer 1: relu(W1 @ x + b1)
    h = jnp.dot(w1_ref[...], xt_ref[...], preferred_element_type=jnp.float32)
    h = jnp.maximum(h + b1_ref[...], 0.0).astype(cdt)
    # Layer 2: relu(W2 @ h + b2)
    h = jnp.dot(w2_ref[...], h, preferred_element_type=jnp.float32)
    h = jnp.maximum(h + b2_ref[...], 0.0).astype(cdt)
    # Layer 3: max_action * tanh(W3 @ h + b3)
    h = jnp.dot(w3_ref[...], h, preferred_element_type=jnp.float32)
    o_ref[...] = (max_action * jnp.tanh(h + b3_ref[...])).astype(o_ref.dtype)


def actor_forward(x, params, max_action, *, compute_dtype=jnp.bfloat16, tb=None):
    """x: [B, in_size] f32. params: w{1,2,3}: [out, in] f32, b{1,2,3}: [out, 1] f32.
    Returns [B, out_size] f32."""
    w1, b1, w2, b2, w3, b3 = (params["w1"], params["b1"], params["w2"],
                              params["b2"], params["w3"], params["b3"])
    B, in_size = x.shape
    out_size = w3.shape[0]

    # Batch tile: a multiple of 128 (lane width); big enough to amortize per-step
    # overhead, tiny vs VMEM even under v7x's 64 MiB budget.
    if tb is None:
        tb = min(512, pl.next_power_of_2(max(B, 128)))
    n_tiles = pl.cdiv(B, tb)
    Bp = n_tiles * tb

    # Put batch on the lane axis: [B, in] -> [in, Bp] (zero-pad batch to tile multiple).
    xt = jnp.pad(x, ((0, Bp - B), (0, 0))).T.astype(compute_dtype)
    w1c, w2c, w3c = (w.astype(compute_dtype) for w in (w1, w2, w3))

    kernel = functools.partial(actor_kernel, max_action=float(max_action))

    # Constant index_map => weights/biases are DMA'd once and stay resident in VMEM.
    const = lambda a: pl.BlockSpec(a.shape, lambda i: (0,) * a.ndim)

    out_t = pl.pallas_call(
        kernel,
        out_shape=jax.ShapeDtypeStruct((out_size, Bp), jnp.float32),
        grid=(n_tiles,),
        in_specs=[
            pl.BlockSpec((in_size, tb), lambda i: (0, i)),  # x^T tile (batch on lanes)
            const(w1c), const(b1), const(w2c), const(b2), const(w3c), const(b3),
        ],
        out_specs=pl.BlockSpec((out_size, tb), lambda i: (0, i)),
        compiler_params=pltpu.CompilerParams(
            dimension_semantics=("parallel",),      # megacore sharding on v7x
            vmem_limit_bytes=32 * 1024 * 1024,
        ),
    )(xt, w1c, b1, w2c, b2, w3c, b3)

    return out_t[:, :B].T  # back to [B, out_size]


def init_actor_params(key, in_size, h1, h2, out_size):
    """Matches nn.Linear default init U(-1/sqrt(fan_in), 1/sqrt(fan_in)).
    Weights stored [out, in] (PyTorch layout), biases [out, 1]."""
    ks = jax.random.split(key, 6)

    def lin(kw, kb, fan_in, fan_out):
        bound = 1.0 / jnp.sqrt(jnp.float32(fan_in))
        w = jax.random.uniform(kw, (fan_out, fan_in), jnp.float32, -bound, bound)
        b = jax.random.uniform(kb, (fan_out, 1), jnp.float32, -bound, bound)
        return w, b

    w1, b1 = lin(ks[0], ks[1], in_size, h1)
    w2, b2 = lin(ks[2], ks[3], h1, h2)
    w3, b3 = lin(ks[4], ks[5], h2, out_size)
    return {"w1": w1, "b1": b1, "w2": w2, "b2": b2, "w3": w3, "b3": b3}


def actor_reference(x, params, max_action):
    """Pure f32 reference matching the PyTorch module."""
    h = jnp.maximum(x @ params["w1"].T + params["b1"].T, 0.0)
    h = jnp.maximum(h @ params["w2"].T + params["b2"].T, 0.0)
    return max_action * jnp.tanh(h @ params["w3"].T + params["b3"].T)


if __name__ == "__main__":
    key = jax.random.PRNGKey(0)
    k_param, k_x = jax.random.split(key)

    batch, in_size, h1, h2, out_size = 2, 16, 32, 32, 4
    max_action = 2.0

    params = init_actor_params(k_param, in_size, h1, h2, out_size)
    x = jax.random.normal(k_x, (batch, in_size), jnp.float32)

    ref = actor_reference(x, params, max_action)

    # Exactness check: f32 matmul path must match the pure-f32 reference tightly.
    out_f32 = jax.block_until_ready(
        actor_forward(x, params, max_action, compute_dtype=jnp.float32))
    assert out_f32.shape == (batch, out_size)
    assert jnp.allclose(out_f32, ref, atol=1e-5, rtol=1e-5), "f32 path mismatch"

    # Performance path: bf16 matmul inputs with f32 accumulation (looser tolerance).
    out_bf16 = jax.block_until_ready(actor_forward(x, params, max_action))
    assert out_bf16.shape == (batch, out_size)
    assert jnp.allclose(out_bf16, ref, atol=3e-2, rtol=3e-2), "bf16 path mismatch"

    print("KERNEL_OK")
</pallas_src>

<mosaic_0001>
module attributes {stable_mosaic.version = 11 : i64} {
  func.func @actor_kernel(%arg0: i32, %arg1: memref<16x128xf32, #tpu.memory_space<vmem>>, %arg2: memref<32x16xf32, #tpu.memory_space<vmem>>, %arg3: memref<32x1xf32, #tpu.memory_space<vmem>>, %arg4: memref<32x32xf32, #tpu.memory_space<vmem>>, %arg5: memref<32x1xf32, #tpu.memory_space<vmem>>, %arg6: memref<4x32xf32, #tpu.memory_space<vmem>>, %arg7: memref<4x1xf32, #tpu.memory_space<vmem>>, %arg8: memref<4x128xf32, #tpu.memory_space<vmem>>) attributes {dimension_semantics = [#tpu.dimension_semantics<parallel>], iteration_bounds = array<i64: 1>, scalar_prefetch = 0 : i64, scratch_operands = 0 : i64, tpu.core_type = #tpu.core_type<tc>, window_params = [{transform_indices = @transform_0, window_bounds = array<i64: 16, 128>}, {pipeline_mode = #tpu.pipeline_mode<synchronous>, transform_indices = @transform_1, window_bounds = array<i64: 32, 16>}, {pipeline_mode = #tpu.pipeline_mode<synchronous>, transform_indices = @transform_2, window_bounds = array<i64: 32, 1>}, {pipeline_mode = #tpu.pipeline_mode<synchronous>, transform_indices = @transform_3, window_bounds = array<i64: 32, 32>}, {pipeline_mode = #tpu.pipeline_mode<synchronous>, transform_indices = @transform_4, window_bounds = array<i64: 32, 1>}, {pipeline_mode = #tpu.pipeline_mode<synchronous>, transform_indices = @transform_5, window_bounds = array<i64: 4, 32>}, {pipeline_mode = #tpu.pipeline_mode<synchronous>, transform_indices = @transform_6, window_bounds = array<i64: 4, 1>}, {transform_indices = @transform_7, window_bounds = array<i64: 4, 128>}]} {
    %c0 = arith.constant 0 : index
    %c0_0 = arith.constant 0 : index
    %0 = vector.load %arg2[%c0, %c0_0] : memref<32x16xf32, #tpu.memory_space<vmem>>, vector<32x16xf32>
    %c0_1 = arith.constant 0 : index
    %c0_2 = arith.constant 0 : index
    %1 = vector.load %arg1[%c0_1, %c0_2] : memref<16x128xf32, #tpu.memory_space<vmem>>, vector<16x128xf32>
    %cst = arith.constant dense<0.000000e+00> : vector<32x128xf32>
    %2 = tpu.matmul %0, %1, %cst {dimension_numbers = #tpu.dot_dimension_numbers<[1], [0], [0], [1], [0, 0, 1, 1], [], []>} : vector<32x16xf32>, vector<16x128xf32>, vector<32x128xf32> -> vector<32x128xf32>
    %c0_3 = arith.constant 0 : index
    %c0_4 = arith.constant 0 : index
    %3 = vector.load %arg3[%c0_3, %c0_4] : memref<32x1xf32, #tpu.memory_space<vmem>>, vector<32x1xf32>
    %4 = vector.broadcast %3 : vector<32x1xf32> to vector<32x128xf32>
    %5 = arith.addf %2, %4 : vector<32x128xf32>
    %cst_5 = arith.constant 0.000000e+00 : f32
    %6 = vector.broadcast %cst_5 : f32 to vector<32x128xf32>
    %7 = arith.maximumf %5, %6 : vector<32x128xf32>
    %c0_6 = arith.constant 0 : index
    %c0_7 = arith.constant 0 : index
    %8 = vector.load %arg4[%c0_6, %c0_7] : memref<32x32xf32, #tpu.memory_space<vmem>>, vector<32x32xf32>
    %cst_8 = arith.constant dense<0.000000e+00> : vector<32x128xf32>
    %9 = tpu.matmul %8, %7, %cst_8 {dimension_numbers = #tpu.dot_dimension_numbers<[1], [0], [0], [1], [0, 0, 1, 1], [], []>} : vector<32x32xf32>, vector<32x128xf32>, vector<32x128xf32> -> vector<32x128xf32>
    %c0_9 = arith.constant 0 : index
    %c0_10 = arith.constant 0 : index
    %10 = vector.load %arg5[%c0_9, %c0_10] : memref<32x1xf32, #tpu.memory_space<vmem>>, vector<32x1xf32>
    %11 = vector.broadcast %10 : vector<32x1xf32> to vector<32x128xf32>
    %12 = arith.addf %9, %11 : vector<32x128xf32>
    %cst_11 = arith.constant 0.000000e+00 : f32
    %13 = vector.broadcast %cst_11 : f32 to vector<32x128xf32>
    %14 = arith.maximumf %12, %13 : vector<32x128xf32>
    %c0_12 = arith.constant 0 : index
    %c0_13 = arith.constant 0 : index
    %15 = vector.load %arg6[%c0_12, %c0_13] : memref<4x32xf32, #tpu.memory_space<vmem>>, vector<4x32xf32>
    %cst_14 = arith.constant dense<0.000000e+00> : vector<4x128xf32>
    %16 = tpu.matmul %15, %14, %cst_14 {dimension_numbers = #tpu.dot_dimension_numbers<[1], [0], [0], [1], [0, 0, 1, 1], [], []>} : vector<4x32xf32>, vector<32x128xf32>, vector<4x128xf32> -> vector<4x128xf32>
    %c0_15 = arith.constant 0 : index
    %c0_16 = arith.constant 0 : index
    %17 = vector.load %arg7[%c0_15, %c0_16] : memref<4x1xf32, #tpu.memory_space<vmem>>, vector<4x1xf32>
    %18 = vector.broadcast %17 : vector<4x1xf32> to vector<4x128xf32>
    %19 = arith.addf %16, %18 : vector<4x128xf32>
    %20 = math.tanh %19 : vector<4x128xf32>
    %cst_17 = arith.constant 2.000000e+00 : f32
    %21 = vector.broadcast %cst_17 : f32 to vector<4x128xf32>
    %22 = arith.mulf %21, %20 : vector<4x128xf32>
    %c0_18 = arith.constant 0 : index
    %c0_19 = arith.constant 0 : index
    %23 = vector.load %arg8[%c0_18, %c0_19] : memref<4x128xf32, #tpu.memory_space<vmem>>, vector<4x128xf32>
    tpu.vector_store %arg8[%c0_18, %c0_19], %22 {strides = array<i32>} : memref<4x128xf32, #tpu.memory_space<vmem>>, vector<4x128xf32>,
    return
  }
  func.func @transform_0(%arg0: i32) -> (i32, i32) {
    %c0_i32 = arith.constant 0 : i32
    %c0_i32_0 = arith.constant 0 : i32
    return %c0_i32, %arg0 : i32, i32
  }
  func.func @transform_1(%arg0: i32) -> (i32, i32) {
    %c0_i32 = arith.constant 0 : i32
    %c0_i32_0 = arith.constant 0 : i32
    %c0_i32_1 = arith.constant 0 : i32
    return %c0_i32, %c0_i32_0 : i32, i32
  }
  func.func @transform_2(%arg0: i32) -> (i32, i32) {
    %c0_i32 = arith.constant 0 : i32
    %c0_i32_0 = arith.constant 0 : i32
    %c0_i32_1 = arith.constant 0 : i32
    return %c0_i32, %c0_i32_0 : i32, i32
  }
  func.func @transform_3(%arg0: i32) -> (i32, i32) {
    %c0_i32 = arith.constant 0 : i32
    %c0_i32_0 = arith.constant 0 : i32
    %c0_i32_1 = arith.constant 0 : i32
    return %c0_i32, %c0_i32_0 : i32, i32
  }
  func.func @transform_4(%arg0: i32) -> (i32, i32) {
    %c0_i32 = arith.constant 0 : i32
    %c0_i32_0 = arith.constant 0 : i32
    %c0_i32_1 = arith.constant 0 : i32
    return %c0_i32, %c0_i32_0 : i32, i32
  }
  func.func @transform_5(%arg0: i32) -> (i32, i32) {
    %c0_i32 = arith.constant 0 : i32
    %c0_i32_0 = arith.constant 0 : i32
    %c0_i32_1 = arith.constant 0 : i32
    return %c0_i32, %c0_i32_0 : i32, i32
  }
  func.func @transform_6(%arg0: i32) -> (i32, i32) {
    %c0_i32 = arith.constant 0 : i32
    %c0_i32_0 = arith.constant 0 : i32
    %c0_i32_1 = arith.constant 0 : i32
    return %c0_i32, %c0_i32_0 : i32, i32
  }
  func.func @transform_7(%arg0: i32) -> (i32, i32) {
    %c0_i32 = arith.constant 0 : i32
    %c0_i32_0 = arith.constant 0 : i32
    return %c0_i32, %arg0 : i32, i32
  }
}

</mosaic_0001>

<llo_original>
// kernel: tpu_custom_call.1
$region0: #{tpu_custom_call.1}
  #allocation0 [shape = 'u32[]', space=smem, size = 0x4, offset = 0x4, fixed_abs, tag = 'smem constant byte address 0x4 - core index']
  #allocation1 [shape = 'u32[72,128]{1,0:T(1,128)}', space=vmem, size = 0x9000, scoped, tag = 'internal scratch']
  %s0 = inlined_call_operand.vmem [shape: f32[16,128], index: 0, kind: input, shape index: {}]
  %s1 = inlined_call_operand.vmem [shape: f32[32,16], index: 1, kind: input, shape index: {}]
  %s2 = inlined_call_operand.vmem [shape: f32[32,1], index: 2, kind: input, shape index: {}]
  %s3 = inlined_call_operand.vmem [shape: f32[32,32], index: 3, kind: input, shape index: {}]
  %s4 = inlined_call_operand.vmem [shape: f32[32,1], index: 4, kind: input, shape index: {}]
  %s5 = inlined_call_operand.vmem [shape: f32[4,32], index: 5, kind: input, shape index: {}]
  %s6 = inlined_call_operand.vmem [shape: f32[4,1], index: 6, kind: input, shape index: {}]
  %s7 = inlined_call_operand.hbm [shape: f32[4,128], index: 7, kind: output, shape index: {}]
  %s8 = sld [smem:[#allocation0]]
  $region38: #{tpu_custom_call.1} parent=0
    _
  %s10 = ssub.s32 1, %s8
  %s11 = scalar_select 0, %s10, %s8
  $region1: #{tpu_custom_call.1} parent=0
    #allocation2 [shape = 'u8[2048]{0}', space=vmem, size = 0x800, scoped, tag = 'output window, operand 0, single buffered']
    #allocation3 [shape = 's32[1]{0}', space=sflag, size = 0x4, scoped, tag = 'scoped memory for tpu_custom_call.1']
    %12 = vsyncpa [#allocation3], 0
    // Predicated region
    $region2: #{tpu_custom_call.1} parent=1 // pred_check
      _
    $region3: #{tpu_custom_call.1} parent=1 // pred_check_branch
      %14 = sbr.rel (0) target = $region5
    $region4: #{tpu_custom_call.1} parent=1 // pred_region
      _
    $region5: #{tpu_custom_call.1} parent=1 // pred_fallthru
      _
    // Predicated region
    $region6: #{tpu_custom_call.1} parent=1 // pred_check
      _
    $region7: #{tpu_custom_call.1} parent=1 // pred_check_branch
      %16 = sbr.rel (0) target = $region9
    $region8: #{tpu_custom_call.1} parent=1 // pred_region
      _
    $region9: #{tpu_custom_call.1} parent=1 // pred_fallthru
      _
    // Predicated region
    $region10: #{tpu_custom_call.1} parent=1 // pred_check
      _
    $region11: #{tpu_custom_call.1} parent=1 // pred_check_branch
      %18 = sbr.rel (0) target = $region13
    $region12: #{tpu_custom_call.1} parent=1 // pred_region
      _
    $region13: #{tpu_custom_call.1} parent=1 // pred_fallthru
      _
    // Predicated region
    $region14: #{tpu_custom_call.1} parent=1 // pred_check
      _
    $region15: #{tpu_custom_call.1} parent=1 // pred_check_branch
      %20 = sbr.rel (0) target = $region17
    $region16: #{tpu_custom_call.1} parent=1 // pred_region
      _
    $region17: #{tpu_custom_call.1} parent=1 // pred_fallthru
      _
    // Predicated region
    $region18: #{tpu_custom_call.1} parent=1 // pred_check
      _
    $region19: #{tpu_custom_call.1} parent=1 // pred_check_branch
      %22 = sbr.rel (0) target = $region21
    $region20: #{tpu_custom_call.1} parent=1 // pred_region
      _
    $region21: #{tpu_custom_call.1} parent=1 // pred_fallthru
      _
    // Predicated region
    $region22: #{tpu_custom_call.1} parent=1 // pred_check
      _
    $region23: #{tpu_custom_call.1} parent=1 // pred_check_branch
      %24 = sbr.rel (0) target = $region25
    $region24: #{tpu_custom_call.1} parent=1 // pred_region
      _
    $region25: #{tpu_custom_call.1} parent=1 // pred_fallthru
      _
    // Predicated region
    $region26: #{tpu_custom_call.1} parent=1 // pred_check
      _
    $region27: #{tpu_custom_call.1} parent=1 // pred_check_branch
      %26 = sbr.rel (0) target = $region29
    $region28: #{tpu_custom_call.1} parent=1 // pred_region
      _
    $region29: #{tpu_custom_call.1} parent=1 // pred_fallthru
      _
    %v27 = vld [vmem:[%s1] sm:$0xff]
    %v28 = vld [vmem:[%s1 + $0x8] sm:$0xff]
    %v29 = vld [vmem:[%s1 + $0x10] sm:$0xff]
    %v30 = vld [vmem:[%s1 + $0x18] sm:$0xff]
    %v31 = vld [vmem:[%s0] sm:$0xff]
    %v32 = vld [vmem:[%s0 + $0x8] sm:$0xff]
    %v33 = vld [vmem:[%s2] sm:$0xff]
    %v34 = vld [vmem:[%s2 + $0x8] sm:$0xff]
    %v35 = vld [vmem:[%s2 + $0x10] sm:$0xff]
    %v36 = vld [vmem:[%s2 + $0x18] sm:$0xff]
    %38 = vset.pattern.permute.xlu0 0
    %39 = vperm.xlu0 %38, %v33
    %v40 = vpop.permute.xlu0 %39
    %43 = vset.pattern.permute.xlu0 0
    %44 = vperm.xlu0 %43, %v34
    %v45 = vpop.permute.xlu0 %44
    %48 = vset.pattern.permute.xlu0 0
    %49 = vperm.xlu0 %48, %v35
    %v50 = vpop.permute.xlu0 %49
    %53 = vset.pattern.permute.xlu0 0
    %54 = vperm.xlu0 %53, %v36
    %v55 = vpop.permute.xlu0 %54
    %vm57 = vcmask 130048
    %v59 = vsel %vm57, %v27, 0
    %v62 = vsel %vm57, %v28, 0
    %v65 = vsel %vm57, %v29, 0
    %v68 = vsel %vm57, %v30, 0
    %70 = vmatpush.msra.mxu0 0.0
    %71 = vmatpush.msra.mxu0 0.0
    %72 = vmatpush.msra.mxu0 0.0
    %73 = vmatpush.msra.mxu0 0.0
    %74 = vmatpush.msra.mxu0 0.0
    %75 = vmatpush.msra.mxu0 0.0
    %76 = vmatpush.msra.mxu0 0.0
    %77 = vmatpush.msra.mxu0 0.0
    %78 = vmatpush.msra.mxu0 0.0
    %79 = vmatpush.msra.mxu0 0.0
    %80 = vmatpush.msra.mxu0 0.0
    %81 = vmatpush.msra.mxu0 0.0
    %82 = vmatpush.msra.mxu0 0.0
    %83 = vmatpush.msra.mxu0 0.0
    %84 = vmatpush.msra.mxu0 %v32
    %85 = vmatpush.msra.mxu0 %v31
    %86 = vmatmul.f32.gmra.mxu0 %v59
    %v87 = vpop.f32.mrf.mxu0
    %v88 = vadd.f32 %v40, %v87
    %89 = vmatmul.f32.gmra.mxu0 %v62
    %v90 = vpop.f32.mrf.mxu0
    %v91 = vadd.f32 %v45, %v90
    %92 = vmatmul.f32.gmra.mxu0 %v65
    %v93 = vpop.f32.mrf.mxu0
    %v94 = vadd.f32 %v50, %v93
    %95 = vmatmul.f32.gmra.mxu0 %v68
    %v96 = vpop.f32.mrf.mxu0
    %v97 = vadd.f32 %v55, %v96
    %98 = vdwg.mxu0
    %v99 = vmax.f32 %v88, 0.0
    %v100 = vmax.f32 %v91, 0.0
    %v101 = vmax.f32 %v94, 0.0
    %v102 = vmax.f32 %v97, 0.0
    %v103 = vld [vmem:[%s3] sm:$0xff]
    %v104 = vld [vmem:[%s3 + $0x8] sm:$0xff]
    %v105 = vld [vmem:[%s3 + $0x10] sm:$0xff]
    %v106 = vld [vmem:[%s3 + $0x18] sm:$0xff]
    %v107 = vld [vmem:[%s4] sm:$0xff]
    %v108 = vld [vmem:[%s4 + $0x8] sm:$0xff]
    %v109 = vld [vmem:[%s4 + $0x10] sm:$0xff]
    %v110 = vld [vmem:[%s4 + $0x18] sm:$0xff]
    %112 = vset.pattern.permute.xlu0 0
    %113 = vperm.xlu0 %112, %v107
    %v114 = vpop.permute.xlu0 %113
    %117 = vset.pattern.permute.xlu0 0
    %118 = vperm.xlu0 %117, %v108
    %v119 = vpop.permute.xlu0 %118
    %122 = vset.pattern.permute.xlu0 0
    %123 = vperm.xlu0 %122, %v109
    %v124 = vpop.permute.xlu0 %123
    %127 = vset.pattern.permute.xlu0 0
    %128 = vperm.xlu0 %127, %v110
    %v129 = vpop.permute.xlu0 %128
    %vm131 = vcmask 261120
    %v133 = vsel %vm131, %v103, 0
    %v136 = vsel %vm131, %v104, 0
    %v139 = vsel %vm131, %v105, 0
    %v142 = vsel %vm131, %v106, 0
    %144 = vmatpush.msra.mxu0 0.0
    %145 = vmatpush.msra.mxu0 0.0
    %146 = vmatpush.msra.mxu0 0.0
    %147 = vmatpush.msra.mxu0 0.0
    %148 = vmatpush.msra.mxu0 0.0
    %149 = vmatpush.msra.mxu0 0.0
    %150 = vmatpush.msra.mxu0 0.0
    %151 = vmatpush.msra.mxu0 0.0
    %152 = vmatpush.msra.mxu0 0.0
    %153 = vmatpush.msra.mxu0 0.0
    %154 = vmatpush.msra.mxu0 0.0
    %155 = vmatpush.msra.mxu0 0.0
    %156 = vmatpush.msra.mxu0 %v102
    %157 = vmatpush.msra.mxu0 %v101
    %158 = vmatpush.msra.mxu0 %v100
    %159 = vmatpush.msra.mxu0 %v99
    %160 = vmatmul.f32.gmra.mxu0 %v133
    %v161 = vpop.f32.mrf.mxu0
    %v162 = vadd.f32 %v114, %v161
    %163 = vmatmul.f32.gmra.mxu0 %v136
    %v164 = vpop.f32.mrf.mxu0
    %v165 = vadd.f32 %v119, %v164
    %166 = vmatmul.f32.gmra.mxu0 %v139
    %v167 = vpop.f32.mrf.mxu0
    %v168 = vadd.f32 %v124, %v167
    %169 = vmatmul.f32.gmra.mxu0 %v142
    %v170 = vpop.f32.mrf.mxu0
    %v171 = vadd.f32 %v129, %v170
    %172 = vdwg.mxu0
    %v173 = vmax.f32 %v162, 0.0
    %v174 = vmax.f32 %v165, 0.0
    %v175 = vmax.f32 %v168, 0.0
    %v176 = vmax.f32 %v171, 0.0
    %v177 = vld [vmem:[%s5] sm:$0xf]
    %v178 = vld [vmem:[%s6] sm:$0xf]
    %180 = vset.pattern.permute.xlu0 0
    %181 = vperm.xlu0 %180, %v178
    %v182 = vpop.permute.xlu0 %181
    %v185 = vsel %vm131, %v177, 0
    %187 = vmatpush.msra.mxu0 0.0
    %188 = vmatpush.msra.mxu0 0.0
    %189 = vmatpush.msra.mxu0 0.0
    %190 = vmatpush.msra.mxu0 0.0
    %191 = vmatpush.msra.mxu0 0.0
    %192 = vmatpush.msra.mxu0 0.0
    %193 = vmatpush.msra.mxu0 0.0
    %194 = vmatpush.msra.mxu0 0.0
    %195 = vmatpush.msra.mxu0 0.0
    %196 = vmatpush.msra.mxu0 0.0
    %197 = vmatpush.msra.mxu0 0.0
    %198 = vmatpush.msra.mxu0 0.0
    %199 = vmatpush.msra.mxu0 %v176
    %200 = vmatpush.msra.mxu0 %v175
    %201 = vmatpush.msra.mxu0 %v174
    %202 = vmatpush.msra.mxu0 %v173
    %203 = vmatmul.f32.gmra.mxu0 %v185
    %v204 = vpop.f32.mrf.mxu0
    %v205 = vadd.f32 %v182, %v204
    %206 = vdwg.mxu0
    %v207 = vtanh.pop %v205
    %v208 = vmul.f32 %v207, 2.0
    %209 = vst [vmem:[#allocation2] sm:$0xf] %v208
    // Predicated region
    $region30: #{tpu_custom_call.1} parent=1 // pred_check
      _
    $region31: #{tpu_custom_call.1} parent=1 // pred_check_branch
      %211 = sbr.rel (0) target = $region33
    $region32: #{tpu_custom_call.1} parent=1 // pred_region
      %213 = vsyncadd [#allocation3], 0
      %s215 = sshll.u32 [#allocation2], 4
      %s216 = int_to_ptr.vmem [resolvable:$true] %s215
      %s217 = sshll.u32 %s7, 4
      %s218 = int_to_ptr.hbm [resolvable:$true] %s217
      %220 = dma.vmem_to_hbm [thread:$0]  %s216, 64, %s218, [#allocation3]
    $region33: #{tpu_custom_call.1} parent=1 // pred_fallthru
      _
    // Predicated region
    $region34: #{tpu_custom_call.1} parent=1 // pred_check
      _
    $region35: #{tpu_custom_call.1} parent=1 // pred_check_branch
      %222 = sbr.rel (0) target = $region37
    $region36: #{tpu_custom_call.1} parent=1 // pred_region
      %224 = dma.done [#allocation3], 64
    $region37: #{tpu_custom_call.1} parent=1 // pred_fallthru
      _
    %225 = vsyncpa [#allocation3], 1

</llo_original>
